<compile_context>
chip_gen: v7x
topology: tpu7x:2x2x1
jax: 0.10.0
libtpu: 0.0.40
codegen_flags: <defaults>
</compile_context>

<pallas_src>
import functools

import jax
import jax.numpy as jnp
from jax.experimental import pallas as pl
from jax.experimental.pallas import tpu as pltpu


# --------------------------------------------------------------------------
# Helpers
# --------------------------------------------------------------------------
def _round_up(n, m):
    return ((n + m - 1) // m) * m


def _sublane(itemsize):
    # Sublane packing granularity for the second-to-last dim.
    return {1: 32, 2: 16, 4: 8}.get(int(itemsize), 8)


def _vmem_budget_bytes():
    """Generation-aware usable VMEM (75% of capacity, 25% headroom).

    ~96 MiB on v5e/v6e (128 MiB VMEM), ~48 MiB on v7x (64 MiB VMEM).
    Falls back to a conservative 48 MiB if the query is unavailable.
    """
    cap = 64 << 20
    try:
        cap = int(pltpu.get_tpu_info().vmem_capacity_bytes)
    except Exception:
        pass
    return (cap // 4) * 3


def _choose_tiles(b, k, dp, x_is, w_is, out_is, budget, *, with_pred_out,
                  with_gt, forced_tk=None):
    """Pick (TB, TK) so double-buffered x tiles + resident weight fit `budget`."""
    sub = _sublane(x_is)
    b_cap = max(sub, min(512, _round_up(max(b, 1), sub)))
    misc = 1 << 20  # bias, loss partials, slack

    def max_tb(tk):
        # Weight counted at 2 buffers (default pipelining may double-buffer
        # even invariant blocks; K-tiled blocks need it anyway).
        fixed = 2 * tk * dp * w_is + misc
        per_row = 2 * tk * x_is + dp * 4            # x (double-buffered) + f32 acc
        if with_pred_out:
            per_row += 2 * dp * out_is              # pred output double-buffered
        if with_gt:
            per_row += 2 * 4                        # gt column (f32)
        tb = (budget - fixed) // per_row
        if tb < sub:
            return 0
        return int(min((tb // sub) * sub, b_cap))

    if forced_tk is not None:
        return max(max_tb(forced_tk), sub), int(forced_tk)

    target_tb = min(256, b_cap)

    # 1) Whole-K tiles if they still allow a big proposal tile.
    tb = max_tb(k)
    if tb >= target_tb:
        return tb, k

    # 2) Tile K (TK must be a 128-multiple divisor of K so no garbage columns
    #    enter the accumulator). Largest feasible TK wins (bigger DMAs).
    if k % 128 == 0:
        n128 = k // 128
        divs = sorted({d for i in range(1, int(n128 ** 0.5) + 1) if n128 % i == 0
                       for d in (i, n128 // i)}, reverse=True)
        for m in divs:
            tk = 128 * m
            if tk >= k:
                continue
            tb2 = max_tb(tk)
            if tb2 >= target_tb:
                return tb2, tk

    # 3) Fallback: whole-K with whatever fits.
    return max(tb, sub), k


# --------------------------------------------------------------------------
# Kernels  (2-D grid: (B tiles ["parallel"], K tiles ["arbitrary", last]))
# --------------------------------------------------------------------------
def _diam_head_infer_kernel(x_ref, w_ref, b_ref, pred_ref, acc_ref):
    k = pl.program_id(1)

    @pl.when(k == 0)
    def _init():
        acc_ref[...] = jnp.zeros_like(acc_ref)

    # layers(x): (TB, TK) @ (TK, DP) on the MXU in native dtype, f32 accumulation.
    acc_ref[...] += jnp.dot(x_ref[...], w_ref[...],
                            preferred_element_type=jnp.float32)

    @pl.when(k == pl.num_programs(1) - 1)
    def _store():
        pred_ref[...] = (acc_ref[...]
                         + b_ref[...].astype(jnp.float32)).astype(pred_ref.dtype)


def _diam_head_train_kernel(x_ref, w_ref, b_ref, gt_ref, loss_ref, acc_ref,
                            *, num_valid, tile_b):
    i = pl.program_id(0)
    k = pl.program_id(1)

    @pl.when(k == 0)
    def _init():
        acc_ref[...] = jnp.zeros_like(acc_ref)

    acc_ref[...] += jnp.dot(x_ref[...], w_ref[...],
                            preferred_element_type=jnp.float32)

    @pl.when(k == pl.num_programs(1) - 1)
    def _loss():
        # diameter_regr_loss: MSE on column 0 only (gt_diameter[:, 0]).
        pred0 = acc_ref[:, 0:1] + b_ref[:, 0:1].astype(jnp.float32)   # (TB, 1)
        row = i * tile_b + jax.lax.broadcasted_iota(jnp.int32, (tile_b, 1), 0)
        valid = row < num_valid
        # NaN-safe masking: ragged-tail rows contain unspecified data.
        diff = jnp.where(valid, gt_ref[...].astype(jnp.float32) - pred0, 0.0)
        partial = jnp.sum(diff * diff)
        # Per-tile partial sum lands in element (0,0) of this tile's (8, 128)
        # lane-dense block; every other element is 0 so the wrapper just sums.
        r = jax.lax.broadcasted_iota(jnp.int32, (8, 128), 0)
        c = jax.lax.broadcasted_iota(jnp.int32, (8, 128), 1)
        loss_ref[...] = jnp.where((r == 0) & (c == 0), partial, 0.0)


# --------------------------------------------------------------------------
# Wrapper
# --------------------------------------------------------------------------
def base_diam_rcnn_head_forward(x, w, b, gt_diameter=None, *, loss_weight=1.0,
                                training=True, tile_b=None, tile_k=None,
                                compute_dtype=None, out_dtype=None):
    """Pallas implementation of BaseDiamRCNNHead.forward (layers = flatten+linear).

    Args:
      x:  (B, C, H, W) region features (NCHW, as in PyTorch). f32 or bf16.
      w:  (C*H*W, D) weight of the linear `layers`.
      b:  (D,) bias.
      gt_diameter: (B, D) ground-truth diameters (training only; only column 0
                   enters the loss, matching `gt_diameter[:, 0]`).
      compute_dtype: optionally stream x/w in this dtype (e.g. jnp.bfloat16)
                     for ~2x HBM bandwidth; accumulation stays f32.
      out_dtype:   inference logits dtype (default: x.dtype — deliberate).
    Returns:
      training=True:  {'loss_diam': scalar}
      training=False: pred_diameter_logits of shape (B, D).
    """
    B, C, H, W = x.shape
    K = C * H * W
    D = w.shape[1]
    odt = jnp.dtype(out_dtype) if out_dtype is not None else jnp.dtype(x.dtype)

    if B == 0:
        # torch path: empty proposal set.
        if training:
            return {"loss_diam": jnp.zeros((), jnp.float32)}
        return jnp.zeros((0, D), dtype=odt)

    x_flat = x.reshape(B, K)                       # row-major == torch x.view(B, -1)
    if compute_dtype is not None:
        x_flat = x_flat.astype(compute_dtype)
        w = w.astype(compute_dtype)

    # Lane-dense output width: pad D up to a multiple of 128 (and no further —
    # the kernel is memory-bound, widening to 256 would only waste VMEM/HBM).
    DP = _round_up(max(D, 1), 128)
    w_p = jnp.pad(w, ((0, 0), (0, DP - D))) if DP != D else w
    b_p = (jnp.pad(b, (0, DP - D)) if DP != D else b).reshape(1, DP)

    x_is = jnp.dtype(x_flat.dtype).itemsize
    w_is = jnp.dtype(w_p.dtype).itemsize
    out_is = jnp.dtype(odt).itemsize
    sub = _sublane(x_is)

    budget = _vmem_budget_bytes()
    forced_tk = None
    if tile_k is not None:
        tk = int(tile_k)
        if tk != K and (K % tk != 0 or tk % 128 != 0):
            raise ValueError("tile_k must equal K or be a 128-multiple divisor of K")
        forced_tk = tk
    TB, TK = _choose_tiles(B, K, DP, x_is, w_is, out_is, budget,
                           with_pred_out=not training, with_gt=training,
                           forced_tk=forced_tk)
    if tile_b is not None:
        TB = max(sub, (int(tile_b) // sub) * sub)
    TB = int(min(TB, max(sub, min(512, _round_up(B, sub)))))

    nb = pl.cdiv(B, TB)
    nk = pl.cdiv(K, TK)
    grid = (nb, nk)
    vmem_limit = int(budget)

    w_stream = K * DP * w_is * (nb if nk > 1 else 1)
    cost = pl.CostEstimate(
        flops=2 * B * K * DP,
        transcendentals=0,
        bytes_accessed=int(x_is * B * K + w_stream
                           + (out_is * B * DP if not training
                              else nb * 8 * 128 * 4)),
    )

    x_spec = pl.BlockSpec((TB, TK), lambda i, k: (i, k))
    w_spec = pl.BlockSpec((TK, DP), lambda i, k: (k, 0))
    b_spec = pl.BlockSpec((1, DP), lambda i, k: (0, 0))

    if training:
        if gt_diameter is None:
            raise ValueError("gt_diameter is required in training mode")
        gt_col = gt_diameter[:, 0:1].astype(jnp.float32)

        kernel = functools.partial(_diam_head_train_kernel,
                                   num_valid=B, tile_b=TB)
        partials = pl.pallas_call(
            kernel,
            grid=grid,
            out_shape=jax.ShapeDtypeStruct((nb * 8, 128), jnp.float32),
            in_specs=[x_spec, w_spec, b_spec,
                      pl.BlockSpec((TB, 1), lambda i, k: (i, 0))],
            out_specs=pl.BlockSpec((8, 128), lambda i, k: (i, 0)),
            scratch_shapes=[pltpu.VMEM((TB, DP), jnp.float32)],
            compiler_params=pltpu.CompilerParams(
                dimension_semantics=("parallel", "arbitrary"),
                vmem_limit_bytes=vmem_limit),
            cost_estimate=cost,
        )(x_flat, w_p, b_p, gt_col)
        # Finish the mean + loss_weight scaling on the tiny partials array.
        loss = jnp.sum(partials) * jnp.float32(float(loss_weight) / float(B))
        return {"loss_diam": loss}

    # Inference: no gt, no loss; B tiles independent -> "parallel" (megacore).
    pred = pl.pallas_call(
        _diam_head_infer_kernel,
        grid=grid,
        out_shape=jax.ShapeDtypeStruct((B, DP), odt),
        in_specs=[x_spec, w_spec, b_spec],
        out_specs=pl.BlockSpec((TB, DP), lambda i, k: (i, 0)),
        scratch_shapes=[pltpu.VMEM((TB, DP), jnp.float32)],
        compiler_params=pltpu.CompilerParams(
            dimension_semantics=("parallel", "arbitrary"),
            vmem_limit_bytes=vmem_limit),
        cost_estimate=cost,
    )(x_flat, w_p, b_p)
    # diameter_inference: caller attaches this to each instance.
    return pred[:, :D]


# --------------------------------------------------------------------------
# Demo / self-check
# --------------------------------------------------------------------------
if __name__ == "__main__":
    key = jax.random.PRNGKey(0)
    kx, kw, kb, kg = jax.random.split(key, 4)

    # B proposals of C-channel HxW pooled region features.  B=10 (not a
    # multiple of the tile) exercises ragged-tile masking; forced small tiles
    # exercise both the multi-step B grid and the K-axis accumulation.
    B, C, H, W = 10, 4, 16, 16
    D = 8
    K = C * H * W

    x = jax.random.normal(kx, (B, C, H, W), dtype=jnp.float32)
    w = jax.random.normal(kw, (K, D), dtype=jnp.float32) * 0.02
    b = jax.random.normal(kb, (D,), dtype=jnp.float32) * 0.01
    gt_diameter = jax.random.uniform(kg, (B, D), dtype=jnp.float32)
    loss_weight = 0.75

    # Plain-JAX reference.
    pred_ref = x.reshape(B, -1) @ w + b
    loss_ref = jnp.mean((gt_diameter[:, 0] - pred_ref[:, 0]) ** 2) * loss_weight

    # 1) Forced small tiles: grid (2, 2) -> ragged last B tile + K accumulation.
    out_tr = base_diam_rcnn_head_forward(
        x, w, b, gt_diameter, loss_weight=loss_weight, training=True,
        tile_b=8, tile_k=512)
    loss_a = jax.block_until_ready(out_tr["loss_diam"])

    pred_a = base_diam_rcnn_head_forward(
        x, w, b, training=False, tile_b=8, tile_k=512)
    pred_a = jax.block_until_ready(pred_a)

    # 2) Auto tiles (generation-aware sizing; single whole-K block here).
    out_tr2 = base_diam_rcnn_head_forward(
        x, w, b, gt_diameter, loss_weight=loss_weight, training=True)
    loss_b = jax.block_until_ready(out_tr2["loss_diam"])

    pred_b = base_diam_rcnn_head_forward(x, w, b, training=False)
    pred_b = jax.block_until_ready(pred_b)

    assert pred_a.shape == (B, D) and pred_b.shape == (B, D)
    assert jnp.allclose(pred_a, pred_ref, atol=1e-4, rtol=1e-4)
    assert jnp.allclose(pred_b, pred_ref, atol=1e-4, rtol=1e-4)
    assert jnp.allclose(loss_a, loss_ref, atol=1e-5, rtol=1e-4)
    assert jnp.allclose(loss_b, loss_ref, atol=1e-5, rtol=1e-4)

    print("KERNEL_OK")
</pallas_src>

<mosaic_0001>
module attributes {stable_mosaic.version = 11 : i64} {
  func.func @_diam_head_train_kernel(%arg0: i32, %arg1: i32, %arg2: memref<8x512xf32, #tpu.memory_space<vmem>>, %arg3: memref<512x128xf32, #tpu.memory_space<vmem>>, %arg4: memref<1x128xf32, #tpu.memory_space<vmem>>, %arg5: memref<8x1xf32, #tpu.memory_space<vmem>>, %arg6: memref<8x128xf32, #tpu.memory_space<vmem>>, %arg7: memref<8x128xf32, #tpu.memory_space<vmem>>) attributes {dimension_semantics = [#tpu.dimension_semantics<parallel>, #tpu.dimension_semantics<arbitrary>], iteration_bounds = array<i64: 2, 2>, scalar_prefetch = 0 : i64, scratch_operands = 1 : i64, tpu.core_type = #tpu.core_type<tc>, window_params = [{transform_indices = @transform_0, window_bounds = array<i64: 8, 512>}, {transform_indices = @transform_1, window_bounds = array<i64: 512, 128>}, {pipeline_mode = #tpu.pipeline_mode<synchronous>, transform_indices = @transform_2, window_bounds = array<i64: 1, 128>}, {transform_indices = @transform_3, window_bounds = array<i64: 8, 1>}, {transform_indices = @transform_4, window_bounds = array<i64: 8, 128>}]} {
    %c0_i32 = arith.constant 0 : i32
    %0 = arith.cmpi eq, %arg1, %c0_i32 : i32
    %1 = arith.extui %0 : i1 to i32
    %c0_i32_0 = arith.constant 0 : i32
    %2 = arith.cmpi ne, %1, %c0_i32_0 : i32
    scf.if %2 {
      %cst_9 = arith.constant 0.000000e+00 : f32
      %12 = vector.broadcast %cst_9 : f32 to vector<8x128xf32>
      %c0_10 = arith.constant 0 : index
      %c0_11 = arith.constant 0 : index
      %13 = vector.load %arg7[%c0_10, %c0_11] : memref<8x128xf32, #tpu.memory_space<vmem>>, vector<8x128xf32>
      tpu.vector_store %arg7[%c0_10, %c0_11], %12 {strides = array<i32>} : memref<8x128xf32, #tpu.memory_space<vmem>>, vector<8x128xf32>,
    } else {
    }
    %c0 = arith.constant 0 : index
    %c0_1 = arith.constant 0 : index
    %3 = vector.load %arg7[%c0, %c0_1] : memref<8x128xf32, #tpu.memory_space<vmem>>, vector<8x128xf32>
    %c0_2 = arith.constant 0 : index
    %c0_3 = arith.constant 0 : index
    %4 = vector.load %arg2[%c0_2, %c0_3] : memref<8x512xf32, #tpu.memory_space<vmem>>, vector<8x512xf32>
    %c0_4 = arith.constant 0 : index
    %c0_5 = arith.constant 0 : index
    %5 = vector.load %arg3[%c0_4, %c0_5] : memref<512x128xf32, #tpu.memory_space<vmem>>, vector<512x128xf32>
    %cst = arith.constant dense<0.000000e+00> : vector<8x128xf32>
    %6 = tpu.matmul %4, %5, %cst {dimension_numbers = #tpu.dot_dimension_numbers<[1], [0], [0], [1], [0, 0, 1, 1], [], []>} : vector<8x512xf32>, vector<512x128xf32>, vector<8x128xf32> -> vector<8x128xf32>
    %7 = arith.addf %3, %6 : vector<8x128xf32>
    %c0_6 = arith.constant 0 : index
    %c0_7 = arith.constant 0 : index
    %8 = vector.load %arg7[%c0_6, %c0_7] : memref<8x128xf32, #tpu.memory_space<vmem>>, vector<8x128xf32>
    tpu.vector_store %arg7[%c0_6, %c0_7], %7 {strides = array<i32>} : memref<8x128xf32, #tpu.memory_space<vmem>>, vector<8x128xf32>,
    %c1_i32 = arith.constant 1 : i32
    %9 = arith.cmpi eq, %arg1, %c1_i32 : i32
    %10 = arith.extui %9 : i1 to i32
    %c0_i32_8 = arith.constant 0 : i32
    %11 = arith.cmpi ne, %10, %c0_i32_8 : i32
    scf.if %11 {
      %c0_9 = arith.constant 0 : index
      %c0_10 = arith.constant 0 : index
      %12 = vector.load %arg7[%c0_9, %c0_10] : memref<8x128xf32, #tpu.memory_space<vmem>>, vector<8x1xf32>
      %c0_11 = arith.constant 0 : index
      %c0_12 = arith.constant 0 : index
      %13 = vector.load %arg4[%c0_11, %c0_12] : memref<1x128xf32, #tpu.memory_space<vmem>>, vector<1x1xf32>
      %14 = vector.broadcast %13 : vector<1x1xf32> to vector<8x1xf32>
      %15 = arith.addf %12, %14 : vector<8x1xf32>
      %c8_i32 = arith.constant 8 : i32
      %16 = arith.muli %arg0, %c8_i32 : i32
      %17 = tpu.iota {dimensions = array<i32: 0>} : vector<8x1xi32>
      %18 = vector.broadcast %16 : i32 to vector<8x1xi32>
      %19 = arith.addi %18, %17 : vector<8x1xi32>
      %c10_i32 = arith.constant 10 : i32
      %20 = vector.broadcast %c10_i32 : i32 to vector<8x1xi32>
      %21 = arith.cmpi slt, %19, %20 : vector<8x1xi32>
      %c0_13 = arith.constant 0 : index
      %c0_14 = arith.constant 0 : index
      %22 = vector.load %arg5[%c0_13, %c0_14] : memref<8x1xf32, #tpu.memory_space<vmem>>, vector<8x1xf32>
      %23 = arith.subf %22, %15 : vector<8x1xf32>
      %cst_15 = arith.constant 0.000000e+00 : f32
      %24 = vector.broadcast %cst_15 : f32 to vector<8x1xf32>
      %25 = arith.select %21, %23, %24 : vector<8x1xi1>, vector<8x1xf32>
      %26 = arith.mulf %25, %25 : vector<8x1xf32>
      %27 = vector.shape_cast %26 : vector<8x1xf32> to vector<1x8x1xf32>
      %cst_16 = arith.constant dense<0.000000e+00> : vector<1xf32>
      %28 = vector.multi_reduction <add>, %27, %cst_16 [1, 2] : vector<1x8x1xf32> to vector<1xf32>
      %29 = vector.shape_cast %28 : vector<1xf32> to vector<1x1x1xf32>
      %30 = vector.extract %29[0, 0, 0] : f32 from vector<1x1x1xf32>
      %31 = tpu.iota {dimensions = array<i32: 0>} : vector<8x128xi32>
      %32 = tpu.iota {dimensions = array<i32: 1>} : vector<8x128xi32>
      %c0_i32_17 = arith.constant 0 : i32
      %33 = vector.broadcast %c0_i32_17 : i32 to vector<8x128xi32>
      %34 = arith.cmpi eq, %31, %33 : vector<8x128xi32>
      %c0_i32_18 = arith.constant 0 : i32
      %35 = vector.broadcast %c0_i32_18 : i32 to vector<8x128xi32>
      %36 = arith.cmpi eq, %32, %35 : vector<8x128xi32>
      %37 = arith.andi %34, %36 : vector<8x128xi1>
      %cst_19 = arith.constant 0.000000e+00 : f32
      %38 = vector.broadcast %30 : f32 to vector<8x128xf32>
      %39 = vector.broadcast %cst_19 : f32 to vector<8x128xf32>
      %40 = arith.select %37, %38, %39 : vector<8x128xi1>, vector<8x128xf32>
      %c0_20 = arith.constant 0 : index
      %c0_21 = arith.constant 0 : index
      %41 = vector.load %arg6[%c0_20, %c0_21] : memref<8x128xf32, #tpu.memory_space<vmem>>, vector<8x128xf32>
      tpu.vector_store %arg6[%c0_20, %c0_21], %40 {strides = array<i32>} : memref<8x128xf32, #tpu.memory_space<vmem>>, vector<8x128xf32>,
    } else {
    }
    return
  }
  func.func @transform_0(%arg0: i32, %arg1: i32) -> (i32, i32) {
    %c0_i32 = arith.constant 0 : i32
    return %arg0, %arg1 : i32, i32
  }
  func.func @transform_1(%arg0: i32, %arg1: i32) -> (i32, i32) {
    %c0_i32 = arith.constant 0 : i32
    %c0_i32_0 = arith.constant 0 : i32
    return %arg1, %c0_i32 : i32, i32
  }
  func.func @transform_2(%arg0: i32, %arg1: i32) -> (i32, i32) {
    %c0_i32 = arith.constant 0 : i32
    %c0_i32_0 = arith.constant 0 : i32
    %c0_i32_1 = arith.constant 0 : i32
    return %c0_i32, %c0_i32_0 : i32, i32
  }
  func.func @transform_3(%arg0: i32, %arg1: i32) -> (i32, i32) {
    %c0_i32 = arith.constant 0 : i32
    %c0_i32_0 = arith.constant 0 : i32
    return %arg0, %c0_i32 : i32, i32
  }
  func.func @transform_4(%arg0: i32, %arg1: i32) -> (i32, i32) {
    %c0_i32 = arith.constant 0 : i32
    %c0_i32_0 = arith.constant 0 : i32
    return %arg0, %c0_i32 : i32, i32
  }
}

</mosaic_0001>

<llo_original>
// kernel: tpu_custom_call.1
$region0: #{tpu_custom_call.1}
  #allocation0 [shape = 'u32[]', space=smem, size = 0x4, offset = 0x4, fixed_abs, tag = 'smem constant byte address 0x4 - core index']
  #allocation1 [shape = 'u32[144,128]{1,0:T(1,128)}', space=vmem, size = 0x12000, scoped, tag = 'internal scratch']
  #allocation2 [shape = 'f32[8,128]{1,0:T(8,128)}', space=vmem, size = 0x1000, scoped, tag = 'scratch operand']
  %s0 = inlined_call_operand.hbm [shape: f32[10,1024], index: 0, kind: input, shape index: {}]
  %s1 = inlined_call_operand.hbm [shape: f32[1024,128], index: 1, kind: input, shape index: {}]
  %s2 = inlined_call_operand.vmem [shape: f32[1,128], index: 2, kind: input, shape index: {}]
  %s3 = inlined_call_operand.vmem [shape: f32[10,1], index: 3, kind: input, shape index: {}]
  %s4 = inlined_call_operand.hbm [shape: f32[16,128], index: 4, kind: output, shape index: {}]
  %s5 = sld [smem:[#allocation0]]
  $region65: #{tpu_custom_call.1} parent=0
    _
  %s7 = ssub.s32 1, %s5
  %s8 = scalar_select 0, %s7, %s5
  $region1: #{tpu_custom_call.1} parent=0
    #allocation3 [shape = 'u8[32768]{0}', space=vmem, size = 0x8000, scoped, tag = 'input window, operand 0']
    #allocation4 [shape = 's32[2]{0}', space=sflag, size = 0x8, scoped, tag = 'scoped memory for tpu_custom_call.1']
    #allocation5 [shape = 's32[2]{0}', space=sflag, size = 0x8, scoped, tag = 'scoped memory for tpu_custom_call.1']
    #allocation6 [shape = 'u8[524288]{0}', space=vmem, size = 0x80000, scoped, tag = 'input window, operand 1']
    #allocation7 [shape = 's32[2]{0}', space=sflag, size = 0x8, scoped, tag = 'scoped memory for tpu_custom_call.1']
    #allocation8 [shape = 'u8[8192]{0}', space=vmem, size = 0x2000, scoped, tag = 'output window, operand 0']
    %9 = vsyncpa [#allocation4], 0
    %s10 = scalar_lea.sflag [#allocation4], 1
    %11 = vsyncpa %s10, 0
    %12 = vsyncpa [#allocation7], 0
    %s13 = scalar_lea.sflag [#allocation7], 1
    %14 = vsyncpa %s13, 0
    %15 = vsyncpa [#allocation5], 0
    %s16 = scalar_lea.sflag [#allocation5], 1
    %17 = vsyncpa %s16, 0
    loop: start=0, step=1, limit=6
    $region2: #{tpu_custom_call.1} parent=1 // loop_pre_header
      _
    $region3: #{tpu_custom_call.1} parent=1 // loop_header
      %s19 = sphi 0, %s23
      %p20 = scmp.ge.s32.totalorder %s19, 6
      %s26 = sphi 0, %s38
      %s27 = sphi 0, %s34
      %s28 = sphi 0, %s26
      %s29 = sphi 0, %s27
      %s30 = sphi 0, %s28
      %s31 = sphi 0, %s29
      %s43 = sphi 0, %s45
      %s46 = sphi 0, %s43
      %s47 = sphi 0, %s46
      %s63 = sphi 0, %s47
      %s69 = sphi 0, %s71
      %s72 = sphi 0, %s69
      %s73 = sphi 0, %s72
      %s89 = sphi 0, %s73
      %s93 = sphi 0, %s93
      %s95 = sphi 0, %s93
      %s96 = sphi 0, %s95
      %s110 = sphi 0, %s96
      %s116 = sphi 0, %s118
      %s119 = sphi 0, %s116
      %s120 = sphi 0, %s119
      %s136 = sphi 0, %s120
      %s142 = sphi 0, %s144
      %s145 = sphi 0, %s142
      %s146 = sphi 0, %s145
      %s162 = sphi 0, %s146
    $region4: #{tpu_custom_call.1} parent=1 // loop_header_branch
      %22 = sbr.rel (%p20) target = $region8
    $region5: #{tpu_custom_call.1} parent=1 // loop_body
      %s24 = ssub.s32 %s19, 1
      %s25 = ssub.s32 %s19, 2
      %s32 = sadd.s32 1, %s27
      %p33 = scmp.ge.s32.totalorder %s32, 2
      %s34 = scalar_select %p33, 0, %s32
      %s35 = sadd.s32 1, %s26
      %s36 = scalar_select %p33, %s35, %s26
      %p37 = scmp.ge.s32.totalorder %s36, 2
      %s38 = scalar_select %p37, 0, %s36
      %s39 = ssub.s32 %s26, %s38
      %s40 = ssub.s32 %s27, %s34
      %s41 = sor.u32 %s39, %s40
      %p42 = scmp.eq.s32.totalorder %s41, 0
      %s44 = sadd.s32 %s43, 1
      %s45 = scalar_select %p42, %s43, %s44
      %p48 = pneg %p42
      %p49 = scmp.eq.s32.totalorder %s19, 3
      %p50 = por %p48, %p49
      %p51 = scmp.ne.s32.totalorder %s43, %s46
      %p52 = scmp.eq.s32.totalorder %s19, 0
      %p53 = por %p51, %p52
      %p54 = scmp.ne.s32.totalorder %s43, %s46
      %p55 = scmp.eq.s32.totalorder %s24, 3
      %p56 = por %p54, %p55
      %p57 = scmp.ne.s32.totalorder %s46, %s47
      %p58 = scmp.eq.s32.totalorder %s24, 0
      %p59 = por %p57, %p58
      %p60 = scmp.ne.s32.totalorder %s46, %s47
      %p61 = scmp.eq.s32.totalorder %s25, 3
      %p62 = por %p60, %p61
      %p64 = scmp.ne.s32.totalorder %s47, %s63
      %p65 = scmp.eq.s32.totalorder %s25, 0
      %p66 = por %p64, %p65
      %s67 = ssub.s32 %s27, %s34
      %p68 = scmp.eq.s32.totalorder %s67, 0
      %s70 = sadd.s32 %s69, 1
      %s71 = scalar_select %p68, %s69, %s70
      %p74 = pneg %p68
      %p75 = scmp.eq.s32.totalorder %s19, 3
      %p76 = por %p74, %p75
      %p77 = scmp.ne.s32.totalorder %s69, %s72
      %p78 = scmp.eq.s32.totalorder %s19, 0
      %p79 = por %p77, %p78
      %p80 = scmp.ne.s32.totalorder %s69, %s72
      %p81 = scmp.eq.s32.totalorder %s24, 3
      %p82 = por %p80, %p81
      %p83 = scmp.ne.s32.totalorder %s72, %s73
      %p84 = scmp.eq.s32.totalorder %s24, 0
      %p85 = por %p83, %p84
      %p86 = scmp.ne.s32.totalorder %s72, %s73
      %p87 = scmp.eq.s32.totalorder %s25, 3
      %p88 = por %p86, %p87
      %p90 = scmp.ne.s32.totalorder %s73, %s89
      %p91 = scmp.eq.s32.totalorder %s25, 0
      %p92 = por %p90, %p91
      %s94 = sadd.s32 %s93, 1
      %p97 = scmp.eq.s32.totalorder %s19, 3
      %p98 = scmp.ne.s32.totalorder %s93, %s95
      %p99 = scmp.eq.s32.totalorder %s19, 0
      %p100 = por %p98, %p99
      %p101 = scmp.ne.s32.totalorder %s93, %s95
      %p102 = scmp.eq.s32.totalorder %s24, 3
      %p103 = por %p101, %p102
      %p104 = scmp.ne.s32.totalorder %s95, %s96
      %p105 = scmp.eq.s32.totalorder %s24, 0
      %p106 = por %p104, %p105
      %p107 = scmp.ne.s32.totalorder %s95, %s96
      %p108 = scmp.eq.s32.totalorder %s25, 3
      %p109 = por %p107, %p108
      %p111 = scmp.ne.s32.totalorder %s96, %s110
      %p112 = scmp.eq.s32.totalorder %s25, 0
      %p113 = por %p111, %p112
      %s114 = ssub.s32 %s26, %s38
      %p115 = scmp.eq.s32.totalorder %s114, 0
      %s117 = sadd.s32 %s116, 1
      %s118 = scalar_select %p115, %s116, %s117
      %p121 = pneg %p115
      %p122 = scmp.eq.s32.totalorder %s19, 3
      %p123 = por %p121, %p122
      %p124 = scmp.ne.s32.totalorder %s116, %s119
      %p125 = scmp.eq.s32.totalorder %s19, 0
      %p126 = por %p124, %p125
      %p127 = scmp.ne.s32.totalorder %s116, %s119
      %p128 = scmp.eq.s32.totalorder %s24, 3
      %p129 = por %p127, %p128
      %p130 = scmp.ne.s32.totalorder %s119, %s120
      %p131 = scmp.eq.s32.totalorder %s24, 0
      %p132 = por %p130, %p131
      %p133 = scmp.ne.s32.totalorder %s119, %s120
      %p134 = scmp.eq.s32.totalorder %s25, 3
      %p135 = por %p133, %p134
      %p137 = scmp.ne.s32.totalorder %s120, %s136
      %p138 = scmp.eq.s32.totalorder %s25, 0
      %p139 = por %p137, %p138
      %s140 = ssub.s32 %s26, %s38
      %p141 = scmp.eq.s32.totalorder %s140, 0
      %s143 = sadd.s32 %s142, 1
      %s144 = scalar_select %p141, %s142, %s143
      %p147 = pneg %p141
      %p148 = scmp.eq.s32.totalorder %s19, 3
      %p149 = por %p147, %p148
      %p150 = scmp.ne.s32.totalorder %s142, %s145
      %p151 = scmp.eq.s32.totalorder %s19, 0
      %p152 = por %p150, %p151
      %p153 = scmp.ne.s32.totalorder %s142, %s145
      %p154 = scmp.eq.s32.totalorder %s24, 3
      %p155 = por %p153, %p154
      %p156 = scmp.ne.s32.totalorder %s145, %s146
      %p157 = scmp.eq.s32.totalorder %s24, 0
      %p158 = por %p156, %p157
      %p159 = scmp.ne.s32.totalorder %s145, %s146
      %p160 = scmp.eq.s32.totalorder %s25, 3
      %p161 = por %p159, %p160
      %p163 = scmp.ne.s32.totalorder %s146, %s162
      %p164 = scmp.eq.s32.totalorder %s25, 0
      %p165 = por %p163, %p164
      %p166 = scmp.le.s32.totalorder 1, %s19
      %p167 = scmp.lt.s32.totalorder %s19, 5
      %p168 = pnand %p166, %p167
      %p169 = pneg %p168
      // Predicated region
      $region9: #{tpu_custom_call.1} parent=5 // pred_check
        _
      $region10: #{tpu_custom_call.1} parent=5 // pred_check_branch
        %171 = sbr.rel (%p168) target = $region12
      $region11: #{tpu_custom_call.1} parent=5 // pred_region
        %s172 = ssub.s32 %s19, 1
        // Predicated region
        $region13: #{tpu_custom_call.1} parent=11 // pred_check
          %p173 = pneg %p106
        $region14: #{tpu_custom_call.1} parent=11 // pred_check_branch
          %175 = sbr.rel (%p173) target = $region16
        $region15: #{tpu_custom_call.1} parent=11 // pred_region
          _
        $region16: #{tpu_custom_call.1} parent=11 // pred_fallthru
          _
      $region12: #{tpu_custom_call.1} parent=5 // pred_fallthru
        _
      %p176 = scmp.lt.s32.totalorder %s19, 4
      // Predicated region
      $region17: #{tpu_custom_call.1} parent=5 // pred_check
        %p177 = pneg %p176
      $region18: #{tpu_custom_call.1} parent=5 // pred_check_branch
        %179 = sbr.rel (%p177) target = $region20
      $region19: #{tpu_custom_call.1} parent=5 // pred_region
        // Predicated region
        $region21: #{tpu_custom_call.1} parent=19 // pred_check
          %p180 = pneg %p53
        $region22: #{tpu_custom_call.1} parent=19 // pred_check_branch
          %182 = sbr.rel (%p180) target = $region24
        $region23: #{tpu_custom_call.1} parent=19 // pred_region
          %s183 = sand.u32 %s43, 1
          %s184 = scalar_lea.sflag [#allocation4], %s183
          %s185 = sand.u32 %s43, 1
          %s186 = smul.addr %s185, 32
          %s187 = scalar_lea.vmem [#allocation3], %s186
          %s188 = smul.u32 4, %s27
          %s190 = ssub.s32 512, 512
          %191 = vsyncadd %s184, %s190
          %s192 = smul.addr %s26, 8
          %s193 = sadd.s32 %s188, %s192
          %s194 = smul.addr %s193, 128
          %s195 = scalar_lea.hbm %s0, %s194
          %s197 = sshll.u32 %s187, 4
          %s198 = int_to_ptr.vmem [resolvable:$true] %s197
          %200 = dma.hbm_to_vmem [thread:$0]  %s195, 512, %s198, %s184
        $region24: #{tpu_custom_call.1} parent=19 // pred_fallthru
          _
        // Predicated region
        $region25: #{tpu_custom_call.1} parent=19 // pred_check
          %p201 = pneg %p79
        $region26: #{tpu_custom_call.1} parent=19 // pred_check_branch
          %203 = sbr.rel (%p201) target = $region28
        $region27: #{tpu_custom_call.1} parent=19 // pred_region
          %s204 = sand.u32 %s69, 1
          %s205 = scalar_lea.sflag [#allocation7], %s204
          %s206 = sand.u32 %s69, 1
          %s207 = smul.addr %s206, 512
          %s208 = scalar_lea.vmem [#allocation6], %s207
          %s209 = smul.u32 64, %s27
          %s211 = ssub.s32 8192, 8192
          %212 = vsyncadd %s205, %s211
          %s213 = smul.addr %s209, 128
          %s214 = scalar_lea.hbm %s1, %s213
          %s215 = sshll.u32 %s208, 4
          %s216 = int_to_ptr.vmem [resolvable:$true] %s215
          %221 = dma.hbm_to_vmem [thread:$0]  %s214, 8192, %s216, %s205, 128, 128, 8
        $region28: #{tpu_custom_call.1} parent=19 // pred_fallthru
          _
        // Predicated region
        $region29: #{tpu_custom_call.1} parent=19 // pred_check
          %p222 = pneg %p126
        $region30: #{tpu_custom_call.1} parent=19 // pred_check_branch
          %224 = sbr.rel (%p222) target = $region32
        $region31: #{tpu_custom_call.1} parent=19 // pred_region
          %p225 = scmp.lt.s32.totalorder %s26, 1
          %s226 = scalar_select %p225, %s26, 1
          %s227 = smul.addr %s226, 8
          %s228 = scalar_lea.vmem %s3, %s227
        $region32: #{tpu_custom_call.1} parent=19 // pred_fallthru
          _
      $region20: #{tpu_custom_call.1} parent=5 // pred_fallthru
        _
      %p229 = scmp.le.s32.totalorder 1, %s19
      %p230 = scmp.lt.s32.totalorder %s19, 5
      %p231 = pnand %p229, %p230
      %p232 = pneg %p231
      // Predicated region
      $region33: #{tpu_custom_call.1} parent=5 // pred_check
        _
      $region34: #{tpu_custom_call.1} parent=5 // pred_check_branch
        %234 = sbr.rel (%p231) target = $region36
      $region35: #{tpu_custom_call.1} parent=5 // pred_region
        %s235 = ssub.s32 %s19, 1
        %s236 = sand.u32 %s46, 1
        %s237 = scalar_lea.sflag [#allocation4], %s236
        %s238 = sand.u32 %s46, 1
        %s239 = smul.addr %s238, 32
        %s240 = scalar_lea.vmem [#allocation3], %s239
        // Predicated region
        $region37: #{tpu_custom_call.1} parent=35 // pred_check
          %p241 = pneg %p59
        $region38: #{tpu_custom_call.1} parent=35 // pred_check_branch
          %243 = sbr.rel (%p241) target = $region40
        $region39: #{tpu_custom_call.1} parent=35 // pred_region
          %244 = dma.done %s237, 512
        $region40: #{tpu_custom_call.1} parent=35 // pred_fallthru
          _
        %s245 = sand.u32 %s72, 1
        %s246 = scalar_lea.sflag [#allocation7], %s245
        %s247 = sand.u32 %s72, 1
        %s248 = smul.addr %s247, 512
        %s249 = scalar_lea.vmem [#allocation6], %s248
        // Predicated region
        $region41: #{tpu_custom_call.1} parent=35 // pred_check
          %p250 = pneg %p85
        $region42: #{tpu_custom_call.1} parent=35 // pred_check_branch
          %252 = sbr.rel (%p250) target = $region44
        $region43: #{tpu_custom_call.1} parent=35 // pred_region
          %253 = dma.done %s246, 8192
        $region44: #{tpu_custom_call.1} parent=35 // pred_fallthru
          _
        %s254 = sand.u32 %s46, 1
        %s255 = scalar_lea.sflag [#allocation4], %s254
        %s256 = sand.u32 %s46, 1
        %s257 = smul.addr %s256, 32
        %s258 = scalar_lea.vmem [#allocation3], %s257
        %p259 = pneg %p59
        %p260 = pneg %p56
        %s261 = sand.u32 %s72, 1
        %s262 = scalar_lea.sflag [#allocation7], %s261
        %s263 = sand.u32 %s72, 1
        %s264 = smul.addr %s263, 512
        %s265 = scalar_lea.vmem [#allocation6], %s264
        %p266 = pneg %p85
        %p267 = pneg %p82
        %p268 = pneg %p106
        %p269 = pneg %p103
        %p270 = scmp.lt.s32.totalorder %s28, 1
        %s271 = scalar_select %p270, %s28, 1
        %s272 = smul.addr %s271, 8
        %s273 = scalar_lea.vmem %s3, %s272
        %p274 = pneg %p132
        %p275 = pneg %p129
        %p276 = pneg %p158
        %p277 = pneg %p155
        %s278 = sand.u32 %s145, 1
        %s279 = scalar_lea.sflag [#allocation5], %s278
        %s280 = sand.u32 %s145, 1
        %s281 = smul.addr %s280, 8
        %s282 = scalar_lea.vmem [#allocation8], %s281
        %s283 = smul.u32 4, %s29
        %s284 = smul.u32 64, %s29
        %p285 = scmp.lt.s32.totalorder %s28, 1
        %s286 = scalar_select %p285, %s28, 1
        %s287 = smul.addr %s286, 8
        %s288 = scalar_lea.vmem %s3, %s287
        %p289 = scmp.eq.s32.totalorder %s29, 0
        // Predicated region
        $region45: #{tpu_custom_call.1} parent=35 // pred_check
          %p290 = pneg %p289
        $region46: #{tpu_custom_call.1} parent=35 // pred_check_branch
          %292 = sbr.rel (%p290) target = $region48
        $region47: #{tpu_custom_call.1} parent=35 // pred_region
          %293 = vst [vmem:[#allocation2] sm:$0xff] 0.0
        $region48: #{tpu_custom_call.1} parent=35 // pred_fallthru
          _
        %v294 = vld [vmem:[#allocation2] sm:$0xff]
        %v295 = vld [vmem:[%s240] sm:$0xff]
        %v296 = vld [vmem:[%s240 + $0x8] sm:$0xff]
        %v297 = vld [vmem:[%s240 + $0x10] sm:$0xff]
        %v298 = vld [vmem:[%s240 + $0x18] sm:$0xff]
        %v299 = vld [vmem:[%s249] sm:$0xff]
        %v300 = vld [vmem:[%s249 + $0x8] sm:$0xff]
        %v301 = vld [vmem:[%s249 + $0x10] sm:$0xff]
        %v302 = vld [vmem:[%s249 + $0x18] sm:$0xff]
        %v303 = vld [vmem:[%s249 + $0x20] sm:$0xff]
        %v304 = vld [vmem:[%s249 + $0x28] sm:$0xff]
        %v305 = vld [vmem:[%s249 + $0x30] sm:$0xff]
        %v306 = vld [vmem:[%s249 + $0x38] sm:$0xff]
        %v307 = vld [vmem:[%s249 + $0x40] sm:$0xff]
        %v308 = vld [vmem:[%s249 + $0x48] sm:$0xff]
        %v309 = vld [vmem:[%s249 + $0x50] sm:$0xff]
        %v310 = vld [vmem:[%s249 + $0x58] sm:$0xff]
        %v311 = vld [vmem:[%s249 + $0x60] sm:$0xff]
        %v312 = vld [vmem:[%s249 + $0x68] sm:$0xff]
        %v313 = vld [vmem:[%s249 + $0x70] sm:$0xff]
        %v314 = vld [vmem:[%s249 + $0x78] sm:$0xff]
        %v315 = vld [vmem:[%s249 + $0x80] sm:$0xff]
        %v316 = vld [vmem:[%s249 + $0x88] sm:$0xff]
        %v317 = vld [vmem:[%s249 + $0x90] sm:$0xff]
        %v318 = vld [vmem:[%s249 + $0x98] sm:$0xff]
        %v319 = vld [vmem:[%s249 + $0xa0] sm:$0xff]
        %v320 = vld [vmem:[%s249 + $0xa8] sm:$0xff]
        %v321 = vld [vmem:[%s249 + $0xb0] sm:$0xff]
        %v322 = vld [vmem:[%s249 + $0xb8] sm:$0xff]
        %v323 = vld [vmem:[%s249 + $0xc0] sm:$0xff]
        %v324 = vld [vmem:[%s249 + $0xc8] sm:$0xff]
        %v325 = vld [vmem:[%s249 + $0xd0] sm:$0xff]
        %v326 = vld [vmem:[%s249 + $0xd8] sm:$0xff]
        %v327 = vld [vmem:[%s249 + $0xe0] sm:$0xff]
        %v328 = vld [vmem:[%s249 + $0xe8] sm:$0xff]
        %v329 = vld [vmem:[%s249 + $0xf0] sm:$0xff]
        %v330 = vld [vmem:[%s249 + $0xf8] sm:$0xff]
        %v331 = vld [vmem:[%s249 + $0x100] sm:$0xff]
        %v332 = vld [vmem:[%s249 + $0x108] sm:$0xff]
        %v333 = vld [vmem:[%s249 + $0x110] sm:$0xff]
        %v334 = vld [vmem:[%s249 + $0x118] sm:$0xff]
        %v335 = vld [vmem:[%s249 + $0x120] sm:$0xff]
        %v336 = vld [vmem:[%s249 + $0x128] sm:$0xff]
        %v337 = vld [vmem:[%s249 + $0x130] sm:$0xff]
        %v338 = vld [vmem:[%s249 + $0x138] sm:$0xff]
        %v339 = vld [vmem:[%s249 + $0x140] sm:$0xff]
        %v340 = vld [vmem:[%s249 + $0x148] sm:$0xff]
        %v341 = vld [vmem:[%s249 + $0x150] sm:$0xff]
        %v342 = vld [vmem:[%s249 + $0x158] sm:$0xff]
        %v343 = vld [vmem:[%s249 + $0x160] sm:$0xff]
        %v344 = vld [vmem:[%s249 + $0x168] sm:$0xff]
        %v345 = vld [vmem:[%s249 + $0x170] sm:$0xff]
        %v346 = vld [vmem:[%s249 + $0x178] sm:$0xff]
        %v347 = vld [vmem:[%s249 + $0x180] sm:$0xff]
        %v348 = vld [vmem:[%s249 + $0x188] sm:$0xff]
        %v349 = vld [vmem:[%s249 + $0x190] sm:$0xff]
        %v350 = vld [vmem:[%s249 + $0x198] sm:$0xff]
        %v351 = vld [vmem:[%s249 + $0x1a0] sm:$0xff]
        %v352 = vld [vmem:[%s249 + $0x1a8] sm:$0xff]
        %v353 = vld [vmem:[%s249 + $0x1b0] sm:$0xff]
        %v354 = vld [vmem:[%s249 + $0x1b8] sm:$0xff]
        %v355 = vld [vmem:[%s249 + $0x1c0] sm:$0xff]
        %v356 = vld [vmem:[%s249 + $0x1c8] sm:$0xff]
        %v357 = vld [vmem:[%s249 + $0x1d0] sm:$0xff]
        %v358 = vld [vmem:[%s249 + $0x1d8] sm:$0xff]
        %v359 = vld [vmem:[%s249 + $0x1e0] sm:$0xff]
        %v360 = vld [vmem:[%s249 + $0x1e8] sm:$0xff]
        %v361 = vld [vmem:[%s249 + $0x1f0] sm:$0xff]
        %v362 = vld [vmem:[%s249 + $0x1f8] sm:$0xff]
        %363 = vmatprep.subr.mxu0 0.0
        %364 = vmatpush1.msra.mxu0 %v299
        %365 = vmatprep.subr.mxu0 0.0
        %366 = vmatpush1.msra.mxu0 %v300
        %367 = vmatprep.subr.mxu0 0.0
        %368 = vmatpush1.msra.mxu0 %v301
        %369 = vmatprep.subr.mxu0 0.0
        %370 = vmatpush1.msra.mxu0 %v302
        %371 = vmatprep.subr.mxu0 0.0
        %372 = vmatpush1.msra.mxu0 %v303
        %373 = vmatprep.subr.mxu0 0.0
        %374 = vmatpush1.msra.mxu0 %v304
        %375 = vmatprep.subr.mxu0 0.0
        %376 = vmatpush1.msra.mxu0 %v305
        %377 = vmatprep.subr.mxu0 0.0
        %378 = vmatpush1.msra.mxu0 %v306
        %379 = vmatprep.subr.mxu0 0.0
        %380 = vmatpush1.msra.mxu0 %v307
        %381 = vmatprep.subr.mxu0 0.0
        %382 = vmatpush1.msra.mxu0 %v308
        %383 = vmatprep.subr.mxu0 0.0
        %384 = vmatpush1.msra.mxu0 %v309
        %385 = vmatprep.subr.mxu0 0.0
        %386 = vmatpush1.msra.mxu0 %v310
        %387 = vmatprep.subr.mxu0 0.0
        %388 = vmatpush1.msra.mxu0 %v311
        %389 = vmatprep.subr.mxu0 0.0
        %390 = vmatpush1.msra.mxu0 %v312
        %391 = vmatprep.subr.mxu0 0.0
        %392 = vmatpush1.msra.mxu0 %v313
        %393 = vmatprep.subr.mxu0 0.0
        %394 = vmatpush1.msra.mxu0 %v314
        %395 = vmatprep.subr.mxu0 0.0
        %396 = vmatpush1.msra.mxu0 %v315
        %397 = vmatprep.subr.mxu0 0.0
        %398 = vmatpush1.msra.mxu0 %v316
        %399 = vmatprep.subr.mxu0 0.0
        %400 = vmatpush1.msra.mxu0 %v317
        %401 = vmatprep.subr.mxu0 0.0
        %402 = vmatpush1.msra.mxu0 %v318
        %403 = vmatprep.subr.mxu0 0.0
        %404 = vmatpush1.msra.mxu0 %v319
        %405 = vmatprep.subr.mxu0 0.0
        %406 = vmatpush1.msra.mxu0 %v320
        %407 = vmatprep.subr.mxu0 0.0
        %408 = vmatpush1.msra.mxu0 %v321
        %409 = vmatprep.subr.mxu0 0.0
        %410 = vmatpush1.msra.mxu0 %v322
        %411 = vmatprep.subr.mxu0 0.0
        %412 = vmatpush1.msra.mxu0 %v323
        %413 = vmatprep.subr.mxu0 0.0
        %414 = vmatpush1.msra.mxu0 %v324
        %415 = vmatprep.subr.mxu0 0.0
        %416 = vmatpush1.msra.mxu0 %v325
        %417 = vmatprep.subr.mxu0 0.0
        %418 = vmatpush1.msra.mxu0 %v326
        %419 = vmatprep.subr.mxu0 0.0
        %420 = vmatpush1.msra.mxu0 %v327
        %421 = vmatprep.subr.mxu0 0.0
        %422 = vmatpush1.msra.mxu0 %v328
        %423 = vmatprep.subr.mxu0 0.0
        %424 = vmatpush1.msra.mxu0 %v329
        %425 = vmatprep.subr.mxu0 0.0
        %426 = vmatpush1.msra.mxu0 %v330
        %427 = vmatprep.mubr.f32.mxu0 %v296
        %428 = vmatmul.mubr.f32.gmra.mrb[0].mxu0 %v295
        %v429 = vpop.f32.mrb[0].mxu0
        %v430 = vadd.f32 0.0, %v429
        %v431 = vpop.f32.mrb[0].mxu0
        %432 = vdwg.mxu0
        %433 = vmatprep.subr.mxu0 0.0
        %434 = vmatpush1.msra.mxu0 %v331
        %435 = vmatprep.subr.mxu0 0.0
        %436 = vmatpush1.msra.mxu0 %v332
        %437 = vmatprep.subr.mxu0 0.0
        %438 = vmatpush1.msra.mxu0 %v333
        %439 = vmatprep.subr.mxu0 0.0
        %440 = vmatpush1.msra.mxu0 %v334
        %441 = vmatprep.subr.mxu0 0.0
        %442 = vmatpush1.msra.mxu0 %v335
        %443 = vmatprep.subr.mxu0 0.0
        %444 = vmatpush1.msra.mxu0 %v336
        %445 = vmatprep.subr.mxu0 0.0
        %446 = vmatpush1.msra.mxu0 %v337
        %447 = vmatprep.subr.mxu0 0.0
        %448 = vmatpush1.msra.mxu0 %v338
        %449 = vmatprep.subr.mxu0 0.0
        %450 = vmatpush1.msra.mxu0 %v339
        %451 = vmatprep.subr.mxu0 0.0
        %452 = vmatpush1.msra.mxu0 %v340
        %453 = vmatprep.subr.mxu0 0.0
        %454 = vmatpush1.msra.mxu0 %v341
        %455 = vmatprep.subr.mxu0 0.0
        %456 = vmatpush1.msra.mxu0 %v342
        %457 = vmatprep.subr.mxu0 0.0
        %458 = vmatpush1.msra.mxu0 %v343
        %459 = vmatprep.subr.mxu0 0.0
        %460 = vmatpush1.msra.mxu0 %v344
        %461 = vmatprep.subr.mxu0 0.0
        %462 = vmatpush1.msra.mxu0 %v345
        %463 = vmatprep.subr.mxu0 0.0
        %464 = vmatpush1.msra.mxu0 %v346
        %465 = vmatprep.subr.mxu0 0.0
        %466 = vmatpush1.msra.mxu0 %v347
        %467 = vmatprep.subr.mxu0 0.0
        %468 = vmatpush1.msra.mxu0 %v348
        %469 = vmatprep.subr.mxu0 0.0
        %470 = vmatpush1.msra.mxu0 %v349
        %471 = vmatprep.subr.mxu0 0.0
        %472 = vmatpush1.msra.mxu0 %v350
        %473 = vmatprep.subr.mxu0 0.0
        %474 = vmatpush1.msra.mxu0 %v351
        %475 = vmatprep.subr.mxu0 0.0
        %476 = vmatpush1.msra.mxu0 %v352
        %477 = vmatprep.subr.mxu0 0.0
        %478 = vmatpush1.msra.mxu0 %v353
        %479 = vmatprep.subr.mxu0 0.0
        %480 = vmatpush1.msra.mxu0 %v354
        %481 = vmatprep.subr.mxu0 0.0
        %482 = vmatpush1.msra.mxu0 %v355
        %483 = vmatprep.subr.mxu0 0.0
        %484 = vmatpush1.msra.mxu0 %v356
        %485 = vmatprep.subr.mxu0 0.0
        %486 = vmatpush1.msra.mxu0 %v357
        %487 = vmatprep.subr.mxu0 0.0
        %488 = vmatpush1.msra.mxu0 %v358
        %489 = vmatprep.subr.mxu0 0.0
        %490 = vmatpush1.msra.mxu0 %v359
        %491 = vmatprep.subr.mxu0 0.0
        %492 = vmatpush1.msra.mxu0 %v360
        %493 = vmatprep.subr.mxu0 0.0
        %494 = vmatpush1.msra.mxu0 %v361
        %495 = vmatprep.subr.mxu0 0.0
        %496 = vmatpush1.msra.mxu0 %v362
        %497 = vmatprep.mubr.f32.mxu0 %v298
        %498 = vmatmul.mubr.f32.gmra.mrb[0].mxu0 %v297
        %v499 = vpop.f32.mrb[0].mxu0
        %v500 = vadd.f32 %v430, %v499
        %v501 = vpop.f32.mrb[0].mxu0
        %502 = vdwg.mxu0
        %v503 = vadd.f32 %v294, %v500
        %504 = vst [vmem:[#allocation2] sm:$0xff] %v503
        %p505 = scmp.eq.s32.totalorder %s29, 1
        // Predicated region
        $region49: #{tpu_custom_call.1} parent=35 // pred_check
          %p506 = pneg %p505
        $region50: #{tpu_custom_call.1} parent=35 // pred_check_branch
          %508 = sbr.rel (%p506) target = $region52
        $region51: #{tpu_custom_call.1} parent=35 // pred_region
          %v509 = vld [vmem:[#allocation2] sm:$0xff]
          %v510 = vld [vmem:[%s2] sm:$0x1]
          %v512 = vlaneseq
          %v513 = vshrl.u32 %v512, 7
          %v514 = vsub.s32 0, %v513
          %v515 = vrot.slane %v510, %v514
          %v517 = vadd.f32 %v509, %v515
          %s518 = smul.u32 %s28, 8
          %v519 = vlaneseq
          %v520 = vshrl.u32 %v519, 7
          %v521 = vstv %s518
          %v522 = vadd.s32 %v521, %v520
          %vm523 = vcmp.lt.s32.totalorder %v522, 10
          %v524 = vld [vmem:[%s288] sm:$0xff]
          %v525 = vsub.f32 %v524, %v517
          %v526 = vsel %vm523, %v525, 0.0
          %v527 = vmul.f32 %v526, %v526
          %vm528 = vcmask 7168
          %v529 = vsel %vm528, %v527, 0.0
          %530 = vadd.xlane.f32.xlu0 %v529
          %v531 = vpop.xlane.xlu0 %530
          %v532 = vrot.slane %v531, 4
          %v533 = vadd.f32 %v531, %v532
          %v534 = vrot.slane %v533, 2
          %v535 = vadd.f32 %v533, %v534
          %v536 = vrot.slane %v535, 1
          %v537 = vadd.f32 %v535, %v536
          %s538 = vtos %v537
          %v539 = vlaneseq
          %v540 = vand.u32 %v539, 127
          %vm541 = vcmp.eq.s32.totalorder %v520, 0
          %vm542 = vcmp.eq.s32.totalorder %v540, 0
          %vm543 = vmand %vm541, %vm542
          %v544 = vstv %s538
          %v545 = vsel %vm543, %v544, 0.0
          %546 = vst [vmem:[%s282] sm:$0xff] %v545
        $region52: #{tpu_custom_call.1} parent=35 // pred_fallthru
          _
        %s547 = sand.u32 %s145, 1
        %s548 = scalar_lea.sflag [#allocation5], %s547
        %s549 = sand.u32 %s145, 1
        %s550 = smul.addr %s549, 8
        %s551 = scalar_lea.vmem [#allocation8], %s550
        // Predicated region
        $region53: #{tpu_custom_call.1} parent=35 // pred_check
          %p552 = pneg %p155
        $region54: #{tpu_custom_call.1} parent=35 // pred_check_branch
          %554 = sbr.rel (%p552) target = $region56
        $region55: #{tpu_custom_call.1} parent=35 // pred_region
          %s556 = ssub.s32 128, 128
          %557 = vsyncadd %s548, %s556
          %s558 = smul.addr %s28, 128
          %s559 = scalar_lea.hbm %s4, %s558
          %s561 = sshll.u32 %s551, 4
          %s562 = int_to_ptr.vmem [resolvable:$true] %s561
          %564 = dma.vmem_to_hbm [thread:$0]  %s562, 128, %s559, %s548
        $region56: #{tpu_custom_call.1} parent=35 // pred_fallthru
          _
      $region36: #{tpu_custom_call.1} parent=5 // pred_fallthru
        _
      %p565 = scmp.le.s32.totalorder 2, %s19
      // Predicated region
      $region57: #{tpu_custom_call.1} parent=5 // pred_check
        %p566 = pneg %p565
      $region58: #{tpu_custom_call.1} parent=5 // pred_check_branch
        %568 = sbr.rel (%p566) target = $region60
      $region59: #{tpu_custom_call.1} parent=5 // pred_region
        %s569 = ssub.s32 %s19, 2
        // Predicated region
        $region61: #{tpu_custom_call.1} parent=59 // pred_check
          %p570 = pneg %p161
        $region62: #{tpu_custom_call.1} parent=59 // pred_check_branch
          %572 = sbr.rel (%p570) target = $region64
        $region63: #{tpu_custom_call.1} parent=59 // pred_region
          %s573 = sand.u32 %s146, 1
          %s574 = scalar_lea.sflag [#allocation5], %s573
          %s575 = sand.u32 %s146, 1
          %s576 = smul.addr %s575, 8
          %s577 = scalar_lea.vmem [#allocation8], %s576
          %578 = dma.done %s574, 128
        $region64: #{tpu_custom_call.1} parent=59 // pred_fallthru
          _
      $region60: #{tpu_custom_call.1} parent=5 // pred_fallthru
        _
    $region6: #{tpu_custom_call.1} parent=1 // loop_footer
      %s23 = sadd.s32 1, %s19
    $region7: #{tpu_custom_call.1} parent=1 // loop_footer_branch
      %18 = sbr.rel target = $region3
    $region8: #{tpu_custom_call.1} parent=1 // loop_exit
      _
    %579 = vsyncpa [#allocation4], 1
    %s580 = scalar_lea.sflag [#allocation4], 1
    %581 = vsyncpa %s580, 1
    %582 = vsyncpa [#allocation7], 1
    %s583 = scalar_lea.sflag [#allocation7], 1
    %584 = vsyncpa %s583, 1
    %585 = vsyncpa [#allocation5], 1
    %s586 = scalar_lea.sflag [#allocation5], 1
    %587 = vsyncpa %s586, 1

</llo_original>
